<compile_context>
chip_gen: v6e
topology: v6e:2x2x1
jax: 0.10.0
libtpu: 0.0.40
codegen_flags: <defaults>
</compile_context>

<pallas_src>
import functools
import math

import jax
import jax.numpy as jnp
from jax.experimental import pallas as pl
from jax.experimental.pallas import tpu as pltpu


_VMEM_LIMIT = 48 * 1024 * 1024   # headroom for v7x (64 MiB physical VMEM)


def _pick_tile_h(H, W, target_m=512):
    """Smallest divisor of H whose row tile yields an MXU M dim >= target_m."""
    for cand in range(1, H + 1):
        if H % cand == 0 and cand * W >= target_m:
            return cand
    return H


# ---------------------------------------------------------------------------
# Pallas kernels
# ---------------------------------------------------------------------------
def _conv_kernel(*refs, K, tileH, Wout, relu, fam, has_res):
    """Fused 'same' KxK stride-1 conv over one row tile of one batch element.

    refs: x_pad, [x2_pad], w_flat(K*K*Cin, Cout), bias(1, Cout), [residual], out
      fam:     conv input is x1*x2 and x1 is added to the conv output (FAM).
      has_res: an extra residual tile (same shape as the output tile) is added.
    The im2col patch (tileH*Wout, K*K*Cin) feeds a single MXU matmul.
    """
    i = 0
    x_ref = refs[i]; i += 1
    x2_ref = None
    if fam:
        x2_ref = refs[i]; i += 1
    w_ref = refs[i]; i += 1
    b_ref = refs[i]; i += 1
    r_ref = None
    if has_res:
        r_ref = refs[i]; i += 1
    o_ref = refs[i]

    pad = K // 2
    cin = x_ref.shape[-1]
    cout = o_ref.shape[-1]
    m = tileH * Wout

    row0 = pl.program_id(1) * tileH
    if tileH % 8 == 0:
        row0 = pl.multiple_of(row0, 8)

    pieces = []
    for kh in range(K):
        for kw in range(K):
            tap = x_ref[0, pl.ds(row0 + kh, tileH), pl.ds(kw, Wout), :]
            if fam:
                tap = tap * x2_ref[0, pl.ds(row0 + kh, tileH), pl.ds(kw, Wout), :]
            pieces.append(tap.reshape(m, cin))
    patch = jnp.concatenate(pieces, axis=-1)                   # (m, K*K*Cin)

    acc = jnp.dot(patch, w_ref[...], preferred_element_type=jnp.float32)
    acc = acc + b_ref[...].astype(jnp.float32)
    if fam:                                                    # FAM: + x1
        res = x_ref[0, pl.ds(row0 + pad, tileH), pl.ds(pad, Wout), :]
        acc = acc + res.reshape(m, cout).astype(jnp.float32)
    if has_res:                                                # fused residual
        acc = acc + r_ref[0].reshape(m, cout).astype(jnp.float32)
    if relu:
        acc = jnp.maximum(acc, 0.0)
    o_ref[0] = acc.reshape(tileH, Wout, cout).astype(o_ref.dtype)


def _cat_conv1x1_kernel(a_ref, b_ref, wa_ref, wb_ref, bias_ref, o_ref):
    """Fused channel-concat + 1x1 conv + ReLU: out = relu(a@Wa + b@Wb + bias)."""
    th, W, Ca = a_ref.shape[1], a_ref.shape[2], a_ref.shape[3]
    Cb = b_ref.shape[3]
    Cout = o_ref.shape[3]
    m = th * W
    acc = jnp.dot(a_ref[0].reshape(m, Ca), wa_ref[...],
                  preferred_element_type=jnp.float32)
    acc = acc + jnp.dot(b_ref[0].reshape(m, Cb), wb_ref[...],
                        preferred_element_type=jnp.float32)
    acc = acc + bias_ref[...].astype(jnp.float32)
    acc = jnp.maximum(acc, 0.0)                 # Convs[*] always use ReLU
    o_ref[0] = acc.reshape(th, W, Cout).astype(o_ref.dtype)


# ---------------------------------------------------------------------------
# Pallas wrappers
# ---------------------------------------------------------------------------
def conv3x3(x, params, *, relu, x2=None, residual=None, out_dtype=jnp.bfloat16):
    """PyTorch Conv2d(kernel=3, stride=1, padding=1) with optional fusions."""
    w_flat, bias = params
    K, pad = 3, 1
    N, H, W, Cin = x.shape
    KKC, Cout = w_flat.shape
    assert KKC == K * K * Cin
    tileH = _pick_tile_h(H, W)
    T = H // tileH
    Hp, Wp = H + 2 * pad, W + 2 * pad

    pads = ((0, 0), (pad, pad), (pad, pad), (0, 0))
    full_spec = pl.BlockSpec((1, Hp, Wp, Cin), lambda n, t: (n, 0, 0, 0))
    inputs = [jnp.pad(x, pads)]
    in_specs = [full_spec]
    fam = x2 is not None
    if fam:
        inputs.append(jnp.pad(x2, pads))
        in_specs.append(full_spec)
    inputs += [w_flat, bias]
    in_specs += [pl.BlockSpec((KKC, Cout), lambda n, t: (0, 0)),
                 pl.BlockSpec((1, Cout), lambda n, t: (0, 0))]
    has_res = residual is not None
    if has_res:
        inputs.append(residual)
        in_specs.append(pl.BlockSpec((1, tileH, W, Cout),
                                     lambda n, t: (n, t, 0, 0)))

    kern = functools.partial(_conv_kernel, K=K, tileH=tileH, Wout=W,
                             relu=relu, fam=fam, has_res=has_res)
    return pl.pallas_call(
        kern,
        out_shape=jax.ShapeDtypeStruct((N, H, W, Cout), out_dtype),
        grid=(N, T),
        in_specs=in_specs,
        out_specs=pl.BlockSpec((1, tileH, W, Cout), lambda n, t: (n, t, 0, 0)),
        compiler_params=pltpu.CompilerParams(
            dimension_semantics=("parallel", "parallel"),
            vmem_limit_bytes=_VMEM_LIMIT),
    )(*inputs)


def cat_conv1x1(a, b, params):
    """torch.cat([a, b], channel) followed by 1x1 conv + ReLU, fused."""
    wa, wb, bias = params
    N, H, W, Ca = a.shape
    Cb = b.shape[-1]
    Cout = wa.shape[-1]
    tileH = _pick_tile_h(H, W)
    T = H // tileH
    return pl.pallas_call(
        _cat_conv1x1_kernel,
        out_shape=jax.ShapeDtypeStruct((N, H, W, Cout), jnp.bfloat16),
        grid=(N, T),
        in_specs=[pl.BlockSpec((1, tileH, W, Ca), lambda n, t: (n, t, 0, 0)),
                  pl.BlockSpec((1, tileH, W, Cb), lambda n, t: (n, t, 0, 0)),
                  pl.BlockSpec((Ca, Cout), lambda n, t: (0, 0)),
                  pl.BlockSpec((Cb, Cout), lambda n, t: (0, 0)),
                  pl.BlockSpec((1, Cout), lambda n, t: (0, 0))],
        out_specs=pl.BlockSpec((1, tileH, W, Cout), lambda n, t: (n, t, 0, 0)),
        compiler_params=pltpu.CompilerParams(
            dimension_semantics=("parallel", "parallel"),
            vmem_limit_bytes=_VMEM_LIMIT),
    )(a, b, wa, wb, bias)


def conv_transpose2d(x, params, *, relu, out_dtype=jnp.bfloat16):
    """PyTorch ConvTranspose2d(kernel=4, stride=2, padding=1) (2x upsample).

    4-phase subpixel decomposition packed into a single 'same' 3x3 conv with
    4*Cout output channels (one per output phase), followed by a cheap
    reshape/transpose interleave.  No zero-inserted input is ever formed.
    """
    w_flat, b4 = params
    Cout = w_flat.shape[1] // 4
    out4 = conv3x3(x, (w_flat, b4), relu=relu, out_dtype=out_dtype)
    N, H, W, _ = out4.shape
    y = out4.reshape(N, H, W, 2, 2, Cout)
    y = jnp.transpose(y, (0, 1, 3, 2, 4, 5))
    return y.reshape(N, 2 * H, 2 * W, Cout)


# ---------------------------------------------------------------------------
# Module building blocks
# ---------------------------------------------------------------------------
def fam_block(x1, x2, params):
    # FAM(x1, x2) = x1 + merge(x1 * x2); fully fused in one conv kernel.
    return conv3x3(x1, params, relu=False, x2=x2)


def res_layers(x, blocks):
    # TODO(synk): SFNet's mode-dependent frequency selection inside ResBlock is
    #             not provided in the prompt; a plain residual conv block is used.
    for p1, p2 in blocks:
        y = conv3x3(x, p1, relu=True)
        x = conv3x3(y, p2, relu=False, residual=x)   # residual add fused
    return x


def dblock_forward(p, x, x0):
    outputs = []
    # level 3 (coarsest)
    z = fam_block(x['z'], x0['z'], p['FAM3'])
    z = res_layers(z, p['res'][3])
    # ConvsOut[0] output is dead in the reference forward -> dropped explicitly.
    z = conv_transpose2d(z, p['feat_extract'][0], relu=True)
    res3 = fam_block(x['res3'], x0['res3'], p['FAM2'])
    z = cat_conv1x1(z, res3, p['Convs'][0])          # concat + 1x1 conv fused
    z = res_layers(z, p['res'][2])
    outputs.append(conv3x3(z, p['ConvsOut'][1], relu=False,
                           residual=x['x_4'], out_dtype=jnp.float32))
    z = conv_transpose2d(z, p['feat_extract'][1], relu=True)
    res2 = fam_block(x['res2'], x0['res2'], p['FAM1'])
    z = cat_conv1x1(z, res2, p['Convs'][1])
    z = res_layers(z, p['res'][1])
    outputs.append(conv3x3(z, p['ConvsOut'][2], relu=False,
                           residual=x['x_2'], out_dtype=jnp.float32))
    z = conv_transpose2d(z, p['feat_extract'][2], relu=True)
    res1 = fam_block(x['res1'], x0['res1'], p['FAM0'])
    z = cat_conv1x1(z, res1, p['Convs'][2])
    z = res_layers(z, p['res'][0])
    outputs.append(conv3x3(z, p['feat_extract'][3], relu=False,
                           residual=x['x'], out_dtype=jnp.float32))
    return outputs


# ---------------------------------------------------------------------------
# Parameter init (PyTorch layout/default-style) + one-time preprocessing
# ---------------------------------------------------------------------------
def _init_conv(key, cin, cout, k):
    kw, kb = jax.random.split(key)
    bound = 1.0 / math.sqrt(cin * k * k)
    w = jax.random.uniform(kw, (cout, cin, k, k), jnp.float32, -bound, bound)
    b = jax.random.uniform(kb, (cout,), jnp.float32, -bound, bound)
    return (w, b)


def _init_convT(key, cin, cout, k):
    kw, kb = jax.random.split(key)
    bound = 1.0 / math.sqrt(cout * k * k)
    w = jax.random.uniform(kw, (cin, cout, k, k), jnp.float32, -bound, bound)
    b = jax.random.uniform(kb, (cout,), jnp.float32, -bound, bound)
    return (w, b)


def init_dblock_params(key, num_res):
    base = 32
    keys = iter(jax.random.split(key, 64))
    p = {}
    p['feat_extract'] = [
        _init_convT(next(keys), base * 8, base * 4, 4),
        _init_convT(next(keys), base * 4, base * 2, 4),
        _init_convT(next(keys), base * 2, base, 4),
        _init_conv(next(keys), base, 3, 3),
    ]
    p['Convs'] = [
        _init_conv(next(keys), base * 8, base * 4, 1),
        _init_conv(next(keys), base * 4, base * 2, 1),
        _init_conv(next(keys), base * 2, base, 1),
    ]
    p['ConvsOut'] = [
        _init_conv(next(keys), base * 8, 3, 3),
        _init_conv(next(keys), base * 4, 3, 3),
        _init_conv(next(keys), base * 2, 3, 3),
    ]
    p['res'] = []
    for ch in (base, base * 2, base * 4, base * 8):
        blocks = []
        for _ in range(num_res):
            blocks.append((_init_conv(next(keys), ch, ch, 3),
                           _init_conv(next(keys), ch, ch, 3)))
        p['res'].append(blocks)
    p['FAM3'] = _init_conv(next(keys), base * 8, base * 8, 3)
    p['FAM2'] = _init_conv(next(keys), base * 4, base * 4, 3)
    p['FAM1'] = _init_conv(next(keys), base * 2, base * 2, 3)
    p['FAM0'] = _init_conv(next(keys), base, base, 3)
    return p


def _prep_conv(wb, dtype=jnp.bfloat16):
    w, b = wb                                    # Conv2d: (Cout, Cin, K, K)
    cout, cin, k, _ = w.shape
    w_flat = jnp.transpose(w, (2, 3, 1, 0)).reshape(k * k * cin, cout)
    return (w_flat.astype(dtype), jnp.asarray(b, jnp.float32).reshape(1, cout))


def _prep_convT(wb, dtype=jnp.bfloat16):
    """ConvTranspose2d(4, stride=2, pad=1) -> equivalent 'same' 3x3 conv weight
    with 4*Cout channels (subpixel phases), flattened to (9*Cin, 4*Cout).

    Output pixel (2m+pa, 2n+pb) equals
        sum_{dh,dw} x[m+dh-1, n+dw-1] . W_t[:, :, kh(pa,dh), kw(pb,dw)]
    with kh(0,.) = {dh0:3, dh1:1} and kh(1,.) = {dh1:2, dh2:0} (missing taps 0).
    """
    w, b = wb                                    # (Cin, Cout, 4, 4)
    cin, cout = w.shape[0], w.shape[1]
    w = jnp.asarray(w, jnp.float32)
    w3 = jnp.zeros((3, 3, cin, 4, cout), jnp.float32)
    kmap = {0: {0: 3, 1: 1}, 1: {1: 2, 2: 0}}    # phase -> {d_offset: k_index}
    for pa in (0, 1):
        for pb in (0, 1):
            for dh, kh in kmap[pa].items():
                for dw, kw in kmap[pb].items():
                    w3 = w3.at[dh, dw, :, 2 * pa + pb, :].set(w[:, :, kh, kw])
    w_flat = w3.reshape(9 * cin, 4 * cout).astype(dtype)
    b4 = jnp.tile(jnp.asarray(b, jnp.float32), 4).reshape(1, 4 * cout)
    return (w_flat, b4)


def _prep_cat_conv(wb, ca, dtype=jnp.bfloat16):
    w, b = wb                                    # (Cout, Ca+Cb, 1, 1)
    cout = w.shape[0]
    wm = w[:, :, 0, 0]
    wa = jnp.transpose(wm[:, :ca]).astype(dtype)
    wb2 = jnp.transpose(wm[:, ca:]).astype(dtype)
    return (wa, wb2, jnp.asarray(b, jnp.float32).reshape(1, cout))


def prepare_params(raw):
    """One-time (outside jit) layout conversion + bf16 cast of all weights."""
    base = 32
    p = {}
    for k in ('FAM3', 'FAM2', 'FAM1', 'FAM0'):
        p[k] = _prep_conv(raw[k])
    p['feat_extract'] = [_prep_convT(raw['feat_extract'][i]) for i in range(3)]
    p['feat_extract'].append(_prep_conv(raw['feat_extract'][3]))
    p['ConvsOut'] = [_prep_conv(wb) for wb in raw['ConvsOut']]
    p['Convs'] = [_prep_cat_conv(raw['Convs'][i], ca)
                  for i, ca in enumerate((base * 4, base * 2, base))]
    p['res'] = [[(_prep_conv(b1), _prep_conv(b2)) for (b1, b2) in level]
                for level in raw['res']]
    return p


# ---------------------------------------------------------------------------
# Self-check of the Pallas conv kernels against lax references (f32)
# ---------------------------------------------------------------------------
def _self_check():
    key = jax.random.PRNGKey(42)
    k1, k2, k3, k4, k5, k6 = jax.random.split(key, 6)

    # plain 'same' 3x3 conv
    x = jax.random.normal(k1, (2, 6, 8, 16), jnp.float32)
    w = jax.random.normal(k2, (8, 16, 3, 3), jnp.float32) * 0.1
    b = jax.random.normal(k3, (8,), jnp.float32) * 0.1
    got = conv3x3(x, _prep_conv((w, b), dtype=jnp.float32), relu=False,
                  out_dtype=jnp.float32)
    ref = jax.lax.conv_general_dilated(
        x, jnp.transpose(w, (2, 3, 1, 0)), (1, 1), 'SAME',
        dimension_numbers=('NHWC', 'HWIO', 'NHWC')) + b
    assert jnp.allclose(got, ref, atol=5e-2, rtol=5e-2), "conv3x3 mismatch"

    # ConvTranspose2d(4, stride 2, pad 1) via subpixel decomposition
    xt = jax.random.normal(k4, (2, 4, 6, 16), jnp.float32)
    wt = jax.random.normal(k5, (16, 8, 4, 4), jnp.float32) * 0.1
    bt = jax.random.normal(k6, (8,), jnp.float32) * 0.1
    got_t = conv_transpose2d(xt, _prep_convT((wt, bt), dtype=jnp.float32),
                             relu=False, out_dtype=jnp.float32)
    wt_hwio = jnp.transpose(wt, (2, 3, 0, 1))[::-1, ::-1]   # spatially flipped
    ref_t = jax.lax.conv_general_dilated(
        xt, wt_hwio, (1, 1), ((2, 2), (2, 2)), lhs_dilation=(2, 2),
        dimension_numbers=('NHWC', 'HWIO', 'NHWC')) + bt
    assert jnp.allclose(got_t, ref_t, atol=5e-2, rtol=5e-2), "convT mismatch"


# ---------------------------------------------------------------------------
# Main
# ---------------------------------------------------------------------------
if __name__ == "__main__":
    _self_check()

    num_res = 2
    mode = "test"    # unused by the simplified ResBlock (see TODO above)
    base = 32
    N, S = 2, 4      # 'z' level spatial = 4x4 -> full resolution 32x32

    key = jax.random.PRNGKey(0)
    k_param, k_data = jax.random.split(key)
    params = prepare_params(init_dblock_params(k_param, num_res))

    dk = iter(jax.random.split(k_data, 16))

    def rnd(shape, dtype=jnp.float32):
        return jax.random.normal(next(dk), shape, jnp.float32).astype(dtype)

    bf16 = jnp.bfloat16
    x = {
        'z':    rnd((N, S, S, base * 8), bf16),
        'res3': rnd((N, 2 * S, 2 * S, base * 4), bf16),
        'res2': rnd((N, 4 * S, 4 * S, base * 2), bf16),
        'res1': rnd((N, 8 * S, 8 * S, base), bf16),
        'x_4':  rnd((N, 2 * S, 2 * S, 3)),
        'x_2':  rnd((N, 4 * S, 4 * S, 3)),
        'x':    rnd((N, 8 * S, 8 * S, 3)),
    }
    x0 = {
        'z':    rnd((N, S, S, base * 8), bf16),
        'res3': rnd((N, 2 * S, 2 * S, base * 4), bf16),
        'res2': rnd((N, 4 * S, 4 * S, base * 2), bf16),
        'res1': rnd((N, 8 * S, 8 * S, base), bf16),
    }

    fwd = jax.jit(dblock_forward)
    outs = jax.block_until_ready(fwd(params, x, x0))

    assert outs[0].shape == (N, 2 * S, 2 * S, 3)
    assert outs[1].shape == (N, 4 * S, 4 * S, 3)
    assert outs[2].shape == (N, 8 * S, 8 * S, 3)
    assert all(bool(jnp.all(jnp.isfinite(o))) for o in outs)
    print("KERNEL_OK")
</pallas_src>

<mosaic_0001>
module attributes {stable_mosaic.version = 11 : i64} {
  func.func @_conv_kernel(%arg0: i32, %arg1: i32, %arg2: memref<1x8x10x16xf32, #tpu.memory_space<vmem>>, %arg3: memref<144x8xf32, #tpu.memory_space<vmem>>, %arg4: memref<1x8xf32, #tpu.memory_space<vmem>>, %arg5: memref<1x6x8x8xf32, #tpu.memory_space<vmem>>) attributes {dimension_semantics = [#tpu.dimension_semantics<parallel>, #tpu.dimension_semantics<parallel>], iteration_bounds = array<i64: 2, 1>, scalar_prefetch = 0 : i64, scratch_operands = 0 : i64, tpu.core_type = #tpu.core_type<tc>, window_params = [{transform_indices = @transform_0, window_bounds = array<i64: 1, 8, 10, 16>}, {pipeline_mode = #tpu.pipeline_mode<synchronous>, transform_indices = @transform_1, window_bounds = array<i64: 144, 8>}, {pipeline_mode = #tpu.pipeline_mode<synchronous>, transform_indices = @transform_2, window_bounds = array<i64: 1, 8>}, {transform_indices = @transform_3, window_bounds = array<i64: 1, 6, 8, 8>}]} {
    %c6_i32 = arith.constant 6 : i32
    %0 = arith.muli %arg1, %c6_i32 : i32
    %c0_i32 = arith.constant 0 : i32
    %1 = arith.addi %0, %c0_i32 : i32
    %c0 = arith.constant 0 : index
    %2 = arith.index_cast %1 : i32 to index
    %c0_0 = arith.constant 0 : index
    %c0_1 = arith.constant 0 : index
    %3 = vector.load %arg2[%c0, %2, %c0_0, %c0_1] : memref<1x8x10x16xf32, #tpu.memory_space<vmem>>, vector<1x6x8x16xf32>
    %4 = vector.shape_cast %3 : vector<1x6x8x16xf32> to vector<6x8x16xf32>
    %5 = vector.shape_cast %4 : vector<6x8x16xf32> to vector<48x16xf32>
    %c0_i32_2 = arith.constant 0 : i32
    %6 = arith.addi %0, %c0_i32_2 : i32
    %c0_3 = arith.constant 0 : index
    %7 = arith.index_cast %6 : i32 to index
    %c1 = arith.constant 1 : index
    %c0_4 = arith.constant 0 : index
    %8 = vector.load %arg2[%c0_3, %7, %c1, %c0_4] : memref<1x8x10x16xf32, #tpu.memory_space<vmem>>, vector<1x6x8x16xf32>
    %9 = vector.shape_cast %8 : vector<1x6x8x16xf32> to vector<6x8x16xf32>
    %10 = vector.shape_cast %9 : vector<6x8x16xf32> to vector<48x16xf32>
    %c0_i32_5 = arith.constant 0 : i32
    %11 = arith.addi %0, %c0_i32_5 : i32
    %c0_6 = arith.constant 0 : index
    %12 = arith.index_cast %11 : i32 to index
    %c2 = arith.constant 2 : index
    %c0_7 = arith.constant 0 : index
    %13 = vector.load %arg2[%c0_6, %12, %c2, %c0_7] : memref<1x8x10x16xf32, #tpu.memory_space<vmem>>, vector<1x6x8x16xf32>
    %14 = vector.shape_cast %13 : vector<1x6x8x16xf32> to vector<6x8x16xf32>
    %15 = vector.shape_cast %14 : vector<6x8x16xf32> to vector<48x16xf32>
    %c1_i32 = arith.constant 1 : i32
    %16 = arith.addi %0, %c1_i32 : i32
    %c0_8 = arith.constant 0 : index
    %17 = arith.index_cast %16 : i32 to index
    %c0_9 = arith.constant 0 : index
    %c0_10 = arith.constant 0 : index
    %18 = vector.load %arg2[%c0_8, %17, %c0_9, %c0_10] : memref<1x8x10x16xf32, #tpu.memory_space<vmem>>, vector<1x6x8x16xf32>
    %19 = vector.shape_cast %18 : vector<1x6x8x16xf32> to vector<6x8x16xf32>
    %20 = vector.shape_cast %19 : vector<6x8x16xf32> to vector<48x16xf32>
    %c1_i32_11 = arith.constant 1 : i32
    %21 = arith.addi %0, %c1_i32_11 : i32
    %c0_12 = arith.constant 0 : index
    %22 = arith.index_cast %21 : i32 to index
    %c1_13 = arith.constant 1 : index
    %c0_14 = arith.constant 0 : index
    %23 = vector.load %arg2[%c0_12, %22, %c1_13, %c0_14] : memref<1x8x10x16xf32, #tpu.memory_space<vmem>>, vector<1x6x8x16xf32>
    %24 = vector.shape_cast %23 : vector<1x6x8x16xf32> to vector<6x8x16xf32>
    %25 = vector.shape_cast %24 : vector<6x8x16xf32> to vector<48x16xf32>
    %c1_i32_15 = arith.constant 1 : i32
    %26 = arith.addi %0, %c1_i32_15 : i32
    %c0_16 = arith.constant 0 : index
    %27 = arith.index_cast %26 : i32 to index
    %c2_17 = arith.constant 2 : index
    %c0_18 = arith.constant 0 : index
    %28 = vector.load %arg2[%c0_16, %27, %c2_17, %c0_18] : memref<1x8x10x16xf32, #tpu.memory_space<vmem>>, vector<1x6x8x16xf32>
    %29 = vector.shape_cast %28 : vector<1x6x8x16xf32> to vector<6x8x16xf32>
    %30 = vector.shape_cast %29 : vector<6x8x16xf32> to vector<48x16xf32>
    %c2_i32 = arith.constant 2 : i32
    %31 = arith.addi %0, %c2_i32 : i32
    %c0_19 = arith.constant 0 : index
    %32 = arith.index_cast %31 : i32 to index
    %c0_20 = arith.constant 0 : index
    %c0_21 = arith.constant 0 : index
    %33 = vector.load %arg2[%c0_19, %32, %c0_20, %c0_21] : memref<1x8x10x16xf32, #tpu.memory_space<vmem>>, vector<1x6x8x16xf32>
    %34 = vector.shape_cast %33 : vector<1x6x8x16xf32> to vector<6x8x16xf32>
    %35 = vector.shape_cast %34 : vector<6x8x16xf32> to vector<48x16xf32>
    %c2_i32_22 = arith.constant 2 : i32
    %36 = arith.addi %0, %c2_i32_22 : i32
    %c0_23 = arith.constant 0 : index
    %37 = arith.index_cast %36 : i32 to index
    %c1_24 = arith.constant 1 : index
    %c0_25 = arith.constant 0 : index
    %38 = vector.load %arg2[%c0_23, %37, %c1_24, %c0_25] : memref<1x8x10x16xf32, #tpu.memory_space<vmem>>, vector<1x6x8x16xf32>
    %39 = vector.shape_cast %38 : vector<1x6x8x16xf32> to vector<6x8x16xf32>
    %40 = vector.shape_cast %39 : vector<6x8x16xf32> to vector<48x16xf32>
    %c2_i32_26 = arith.constant 2 : i32
    %41 = arith.addi %0, %c2_i32_26 : i32
    %c0_27 = arith.constant 0 : index
    %42 = arith.index_cast %41 : i32 to index
    %c2_28 = arith.constant 2 : index
    %c0_29 = arith.constant 0 : index
    %43 = vector.load %arg2[%c0_27, %42, %c2_28, %c0_29] : memref<1x8x10x16xf32, #tpu.memory_space<vmem>>, vector<1x6x8x16xf32>
    %44 = vector.shape_cast %43 : vector<1x6x8x16xf32> to vector<6x8x16xf32>
    %45 = vector.shape_cast %44 : vector<6x8x16xf32> to vector<48x16xf32>
    %46 = tpu.concatenate %5, %10, %15, %20, %25, %30, %35, %40, %45 in 1 : vector<48x16xf32>, vector<48x16xf32>, vector<48x16xf32>, vector<48x16xf32>, vector<48x16xf32>, vector<48x16xf32>, vector<48x16xf32>, vector<48x16xf32>, vector<48x16xf32> -> vector<48x144xf32>
    %c0_30 = arith.constant 0 : index
    %c0_31 = arith.constant 0 : index
    %47 = vector.load %arg3[%c0_30, %c0_31] : memref<144x8xf32, #tpu.memory_space<vmem>>, vector<144x8xf32>
    %cst = arith.constant dense<0.000000e+00> : vector<48x8xf32>
    %48 = tpu.matmul %46, %47, %cst {dimension_numbers = #tpu.dot_dimension_numbers<[1], [0], [0], [1], [0, 0, 1, 1], [], []>} : vector<48x144xf32>, vector<144x8xf32>, vector<48x8xf32> -> vector<48x8xf32>
    %c0_32 = arith.constant 0 : index
    %c0_33 = arith.constant 0 : index
    %49 = vector.load %arg4[%c0_32, %c0_33] : memref<1x8xf32, #tpu.memory_space<vmem>>, vector<1x8xf32>
    %50 = vector.broadcast %49 : vector<1x8xf32> to vector<48x8xf32>
    %51 = arith.addf %48, %50 : vector<48x8xf32>
    %52 = vector.shape_cast %51 : vector<48x8xf32> to vector<6x8x8xf32>
    %c0_34 = arith.constant 0 : index
    %c0_35 = arith.constant 0 : index
    %c0_36 = arith.constant 0 : index
    %c0_37 = arith.constant 0 : index
    %53 = vector.load %arg5[%c0_34, %c0_35, %c0_36, %c0_37] : memref<1x6x8x8xf32, #tpu.memory_space<vmem>>, vector<1x6x8x8xf32>
    %54 = vector.shape_cast %53 : vector<1x6x8x8xf32> to vector<6x8x8xf32>
    %55 = vector.shape_cast %52 : vector<6x8x8xf32> to vector<1x6x8x8xf32>
    tpu.vector_store %arg5[%c0_34, %c0_35, %c0_36, %c0_37], %55 {strides = array<i32>} : memref<1x6x8x8xf32, #tpu.memory_space<vmem>>, vector<1x6x8x8xf32>,
    return
  }
  func.func @transform_0(%arg0: i32, %arg1: i32) -> (i32, i32, i32, i32) {
    %c0_i32 = arith.constant 0 : i32
    %c0_i32_0 = arith.constant 0 : i32
    %c0_i32_1 = arith.constant 0 : i32
    %c0_i32_2 = arith.constant 0 : i32
    return %arg0, %c0_i32, %c0_i32_0, %c0_i32_1 : i32, i32, i32, i32
  }
  func.func @transform_1(%arg0: i32, %arg1: i32) -> (i32, i32) {
    %c0_i32 = arith.constant 0 : i32
    %c0_i32_0 = arith.constant 0 : i32
    %c0_i32_1 = arith.constant 0 : i32
    return %c0_i32, %c0_i32_0 : i32, i32
  }
  func.func @transform_2(%arg0: i32, %arg1: i32) -> (i32, i32) {
    %c0_i32 = arith.constant 0 : i32
    %c0_i32_0 = arith.constant 0 : i32
    %c0_i32_1 = arith.constant 0 : i32
    return %c0_i32, %c0_i32_0 : i32, i32
  }
  func.func @transform_3(%arg0: i32, %arg1: i32) -> (i32, i32, i32, i32) {
    %c0_i32 = arith.constant 0 : i32
    %c0_i32_0 = arith.constant 0 : i32
    %c0_i32_1 = arith.constant 0 : i32
    return %arg0, %arg1, %c0_i32, %c0_i32_0 : i32, i32, i32, i32
  }
}

</mosaic_0001>

<llo_original>
// kernel: tpu_custom_call.1
$region0: #{tpu_custom_call.1}
  #allocation0 [shape = 'u32[]', space=smem, size = 0x4, offset = 0x4, fixed_abs, tag = 'smem constant byte address 0x4 - core index']
  #allocation1 [shape = 'u32[144,128]{1,0:T(1,128)}', space=vmem, size = 0x12000, scoped, tag = 'internal scratch']
  %s0 = inlined_call_operand.vmem [shape: f32[2,8,10,16], index: 0, kind: input, shape index: {}]
  %s1 = inlined_call_operand.vmem [shape: f32[144,8], index: 1, kind: input, shape index: {}]
  %s2 = inlined_call_operand.vmem [shape: f32[1,8], index: 2, kind: input, shape index: {}]
  %s3 = inlined_call_operand.hbm [shape: f32[2,6,8,8], index: 3, kind: output, shape index: {}]
  %s4 = sld [smem:[#allocation0]]
  $region45: #{tpu_custom_call.1} parent=0
    _
  %s6 = ssub.s32 1, %s4
  %s7 = scalar_select 0, %s6, %s4
  $region1: #{tpu_custom_call.1} parent=0
    #allocation2 [shape = 'u8[49152]{0}', space=vmem, size = 0xc000, scoped, tag = 'output window, operand 0']
    #allocation3 [shape = 's32[2]{0}', space=sflag, size = 0x8, scoped, tag = 'scoped memory for tpu_custom_call.1']
    %8 = vsyncpa [#allocation3], 0
    %s9 = scalar_lea.sflag [#allocation3], 1
    %10 = vsyncpa %s9, 0
    loop: start=0, step=1, limit=4
    $region2: #{tpu_custom_call.1} parent=1 // loop_pre_header
      _
    $region3: #{tpu_custom_call.1} parent=1 // loop_header
      %s12 = sphi 0, %s16
      %p13 = scmp.ge.s32.totalorder %s12, 4
      %s19 = sphi 0, %s31
      %s20 = sphi 0, %s27
      %s21 = sphi 0, %s19
      %s22 = sphi 0, %s20
      %s23 = sphi 0, %s21
      %s24 = sphi 0, %s22
      %s34 = sphi 0, %s36
      %s37 = sphi 0, %s34
      %s38 = sphi 0, %s37
      %s54 = sphi 0, %s38
      %s58 = sphi 0, %s58
      %s60 = sphi 0, %s58
      %s61 = sphi 0, %s60
      %s75 = sphi 0, %s61
      %s79 = sphi 0, %s79
      %s81 = sphi 0, %s79
      %s82 = sphi 0, %s81
      %s96 = sphi 0, %s82
      %s104 = sphi 0, %s106
      %s107 = sphi 0, %s104
      %s108 = sphi 0, %s107
      %s124 = sphi 0, %s108
    $region4: #{tpu_custom_call.1} parent=1 // loop_header_branch
      %15 = sbr.rel (%p13) target = $region8
    $region5: #{tpu_custom_call.1} parent=1 // loop_body
      %s17 = ssub.s32 %s12, 1
      %s18 = ssub.s32 %s12, 2
      %s25 = sadd.s32 1, %s20
      %p26 = scmp.ge.s32.totalorder %s25, 1
      %s27 = scalar_select %p26, 0, %s25
      %s28 = sadd.s32 1, %s19
      %s29 = scalar_select %p26, %s28, %s19
      %p30 = scmp.ge.s32.totalorder %s29, 2
      %s31 = scalar_select %p30, 0, %s29
      %s32 = ssub.s32 %s19, %s31
      %p33 = scmp.eq.s32.totalorder %s32, 0
      %s35 = sadd.s32 %s34, 1
      %s36 = scalar_select %p33, %s34, %s35
      %p39 = pneg %p33
      %p40 = scmp.eq.s32.totalorder %s12, 1
      %p41 = por %p39, %p40
      %p42 = scmp.ne.s32.totalorder %s34, %s37
      %p43 = scmp.eq.s32.totalorder %s12, 0
      %p44 = por %p42, %p43
      %p45 = scmp.ne.s32.totalorder %s34, %s37
      %p46 = scmp.eq.s32.totalorder %s17, 1
      %p47 = por %p45, %p46
      %p48 = scmp.ne.s32.totalorder %s37, %s38
      %p49 = scmp.eq.s32.totalorder %s17, 0
      %p50 = por %p48, %p49
      %p51 = scmp.ne.s32.totalorder %s37, %s38
      %p52 = scmp.eq.s32.totalorder %s18, 1
      %p53 = por %p51, %p52
      %p55 = scmp.ne.s32.totalorder %s38, %s54
      %p56 = scmp.eq.s32.totalorder %s18, 0
      %p57 = por %p55, %p56
      %s59 = sadd.s32 %s58, 1
      %p62 = scmp.eq.s32.totalorder %s12, 1
      %p63 = scmp.ne.s32.totalorder %s58, %s60
      %p64 = scmp.eq.s32.totalorder %s12, 0
      %p65 = por %p63, %p64
      %p66 = scmp.ne.s32.totalorder %s58, %s60
      %p67 = scmp.eq.s32.totalorder %s17, 1
      %p68 = por %p66, %p67
      %p69 = scmp.ne.s32.totalorder %s60, %s61
      %p70 = scmp.eq.s32.totalorder %s17, 0
      %p71 = por %p69, %p70
      %p72 = scmp.ne.s32.totalorder %s60, %s61
      %p73 = scmp.eq.s32.totalorder %s18, 1
      %p74 = por %p72, %p73
      %p76 = scmp.ne.s32.totalorder %s61, %s75
      %p77 = scmp.eq.s32.totalorder %s18, 0
      %p78 = por %p76, %p77
      %s80 = sadd.s32 %s79, 1
      %p83 = scmp.eq.s32.totalorder %s12, 1
      %p84 = scmp.ne.s32.totalorder %s79, %s81
      %p85 = scmp.eq.s32.totalorder %s12, 0
      %p86 = por %p84, %p85
      %p87 = scmp.ne.s32.totalorder %s79, %s81
      %p88 = scmp.eq.s32.totalorder %s17, 1
      %p89 = por %p87, %p88
      %p90 = scmp.ne.s32.totalorder %s81, %s82
      %p91 = scmp.eq.s32.totalorder %s17, 0
      %p92 = por %p90, %p91
      %p93 = scmp.ne.s32.totalorder %s81, %s82
      %p94 = scmp.eq.s32.totalorder %s18, 1
      %p95 = por %p93, %p94
      %p97 = scmp.ne.s32.totalorder %s82, %s96
      %p98 = scmp.eq.s32.totalorder %s18, 0
      %p99 = por %p97, %p98
      %s100 = ssub.s32 %s19, %s31
      %s101 = ssub.s32 %s20, %s27
      %s102 = sor.u32 %s100, %s101
      %p103 = scmp.eq.s32.totalorder %s102, 0
      %s105 = sadd.s32 %s104, 1
      %s106 = scalar_select %p103, %s104, %s105
      %p109 = pneg %p103
      %p110 = scmp.eq.s32.totalorder %s12, 1
      %p111 = por %p109, %p110
      %p112 = scmp.ne.s32.totalorder %s104, %s107
      %p113 = scmp.eq.s32.totalorder %s12, 0
      %p114 = por %p112, %p113
      %p115 = scmp.ne.s32.totalorder %s104, %s107
      %p116 = scmp.eq.s32.totalorder %s17, 1
      %p117 = por %p115, %p116
      %p118 = scmp.ne.s32.totalorder %s107, %s108
      %p119 = scmp.eq.s32.totalorder %s17, 0
      %p120 = por %p118, %p119
      %p121 = scmp.ne.s32.totalorder %s107, %s108
      %p122 = scmp.eq.s32.totalorder %s18, 1
      %p123 = por %p121, %p122
      %p125 = scmp.ne.s32.totalorder %s108, %s124
      %p126 = scmp.eq.s32.totalorder %s18, 0
      %p127 = por %p125, %p126
      %p128 = scmp.le.s32.totalorder 1, %s12
      %p129 = scmp.lt.s32.totalorder %s12, 3
      %p130 = pnand %p128, %p129
      %p131 = pneg %p130
      // Predicated region
      $region9: #{tpu_custom_call.1} parent=5 // pred_check
        _
      $region10: #{tpu_custom_call.1} parent=5 // pred_check_branch
        %133 = sbr.rel (%p130) target = $region12
      $region11: #{tpu_custom_call.1} parent=5 // pred_region
        %s134 = ssub.s32 %s12, 1
        // Predicated region
        $region13: #{tpu_custom_call.1} parent=11 // pred_check
          %p135 = pneg %p71
        $region14: #{tpu_custom_call.1} parent=11 // pred_check_branch
          %137 = sbr.rel (%p135) target = $region16
        $region15: #{tpu_custom_call.1} parent=11 // pred_region
          _
        $region16: #{tpu_custom_call.1} parent=11 // pred_fallthru
          _
        // Predicated region
        $region17: #{tpu_custom_call.1} parent=11 // pred_check
          %p138 = pneg %p92
        $region18: #{tpu_custom_call.1} parent=11 // pred_check_branch
          %140 = sbr.rel (%p138) target = $region20
        $region19: #{tpu_custom_call.1} parent=11 // pred_region
          _
        $region20: #{tpu_custom_call.1} parent=11 // pred_fallthru
          _
      $region12: #{tpu_custom_call.1} parent=5 // pred_fallthru
        _
      %p141 = scmp.lt.s32.totalorder %s12, 2
      // Predicated region
      $region21: #{tpu_custom_call.1} parent=5 // pred_check
        %p142 = pneg %p141
      $region22: #{tpu_custom_call.1} parent=5 // pred_check_branch
        %144 = sbr.rel (%p142) target = $region24
      $region23: #{tpu_custom_call.1} parent=5 // pred_region
        // Predicated region
        $region25: #{tpu_custom_call.1} parent=23 // pred_check
          %p145 = pneg %p44
        $region26: #{tpu_custom_call.1} parent=23 // pred_check_branch
          %147 = sbr.rel (%p145) target = $region28
        $region27: #{tpu_custom_call.1} parent=23 // pred_region
          %p148 = scmp.lt.s32.totalorder %s19, 1
          %s149 = scalar_select %p148, %s19, 1
          %s150 = smul.addr %s149, 16
          %s151 = smul.addr %s150, 8
          %s152 = scalar_lea.vmem %s0, %s151
        $region28: #{tpu_custom_call.1} parent=23 // pred_fallthru
          _
      $region24: #{tpu_custom_call.1} parent=5 // pred_fallthru
        _
      %p153 = scmp.le.s32.totalorder 1, %s12
      %p154 = scmp.lt.s32.totalorder %s12, 3
      %p155 = pnand %p153, %p154
      %p156 = pneg %p155
      // Predicated region
      $region29: #{tpu_custom_call.1} parent=5 // pred_check
        _
      $region30: #{tpu_custom_call.1} parent=5 // pred_check_branch
        %158 = sbr.rel (%p155) target = $region32
      $region31: #{tpu_custom_call.1} parent=5 // pred_region
        %s159 = ssub.s32 %s12, 1
        %p160 = scmp.lt.s32.totalorder %s21, 1
        %s161 = scalar_select %p160, %s21, 1
        %s162 = smul.addr %s161, 16
        %s163 = smul.addr %s162, 8
        %s164 = scalar_lea.vmem %s0, %s163
        %p165 = pneg %p50
        %p166 = pneg %p47
        %p167 = pneg %p71
        %p168 = pneg %p68
        %p169 = pneg %p92
        %p170 = pneg %p89
        %p171 = pneg %p120
        %p172 = pneg %p117
        %s173 = sand.u32 %s107, 1
        %s174 = scalar_lea.sflag [#allocation3], %s173
        %s175 = sand.u32 %s107, 1
        %s176 = smul.addr %s175, 48
        %s177 = scalar_lea.vmem [#allocation2], %s176
        %p178 = scmp.lt.s32.totalorder %s21, 1
        %s179 = scalar_select %p178, %s21, 1
        %s180 = smul.addr %s179, 16
        %s181 = smul.addr %s180, 8
        %s182 = scalar_lea.vmem %s0, %s181
        %s183 = smul.u32 6, %s22
        %s184 = smul.u32 %s22, 6
        %s185 = smul.u32 %s184, 16
        %s186 = scalar_lea.vmem %s182, %s185
        %v187 = vld [vmem:[%s186] sm:$0xff]
        %v188 = vld [vmem:[%s186 + $0x10] sm:$0xff]
        %v189 = vld [vmem:[%s186 + $0x20] sm:$0xff]
        %v190 = vld [vmem:[%s186 + $0x30] sm:$0xff]
        %v191 = vld [vmem:[%s186 + $0x40] sm:$0xff]
        %v192 = vld [vmem:[%s186 + $0x50] sm:$0xff]
        %v193 = vld [vmem:[%s186 + $0x1] sm:$0xff]
        %v194 = vld [vmem:[%s186 + $0x11] sm:$0xff]
        %v195 = vld [vmem:[%s186 + $0x21] sm:$0xff]
        %v196 = vld [vmem:[%s186 + $0x31] sm:$0xff]
        %v197 = vld [vmem:[%s186 + $0x41] sm:$0xff]
        %v198 = vld [vmem:[%s186 + $0x51] sm:$0xff]
        %v199 = vld [vmem:[%s186 + $0x2] sm:$0xff]
        %v200 = vld [vmem:[%s186 + $0x12] sm:$0xff]
        %v201 = vld [vmem:[%s186 + $0x22] sm:$0xff]
        %v202 = vld [vmem:[%s186 + $0x32] sm:$0xff]
        %v203 = vld [vmem:[%s186 + $0x42] sm:$0xff]
        %v204 = vld [vmem:[%s186 + $0x52] sm:$0xff]
        %s205 = sadd.s32 %s184, 1
        %s206 = smul.u32 %s205, 16
        %s207 = scalar_lea.vmem %s182, %s206
        %v208 = vld [vmem:[%s207] sm:$0xff]
        %v209 = vld [vmem:[%s207 + $0x10] sm:$0xff]
        %v210 = vld [vmem:[%s207 + $0x20] sm:$0xff]
        %v211 = vld [vmem:[%s207 + $0x30] sm:$0xff]
        %v212 = vld [vmem:[%s207 + $0x40] sm:$0xff]
        %v213 = vld [vmem:[%s207 + $0x50] sm:$0xff]
        %v214 = vld [vmem:[%s207 + $0x1] sm:$0xff]
        %v215 = vld [vmem:[%s207 + $0x11] sm:$0xff]
        %v216 = vld [vmem:[%s207 + $0x21] sm:$0xff]
        %v217 = vld [vmem:[%s207 + $0x31] sm:$0xff]
        %v218 = vld [vmem:[%s207 + $0x41] sm:$0xff]
        %v219 = vld [vmem:[%s207 + $0x51] sm:$0xff]
        %v220 = vld [vmem:[%s207 + $0x2] sm:$0xff]
        %v221 = vld [vmem:[%s207 + $0x12] sm:$0xff]
        %v222 = vld [vmem:[%s207 + $0x22] sm:$0xff]
        %v223 = vld [vmem:[%s207 + $0x32] sm:$0xff]
        %v224 = vld [vmem:[%s207 + $0x42] sm:$0xff]
        %v225 = vld [vmem:[%s207 + $0x52] sm:$0xff]
        %s226 = sadd.s32 %s184, 2
        %s227 = smul.u32 %s226, 16
        %s228 = scalar_lea.vmem %s182, %s227
        %v229 = vld [vmem:[%s228] sm:$0xff]
        %v230 = vld [vmem:[%s228 + $0x10] sm:$0xff]
        %v231 = vld [vmem:[%s228 + $0x20] sm:$0xff]
        %v232 = vld [vmem:[%s228 + $0x30] sm:$0xff]
        %v233 = vld [vmem:[%s228 + $0x40] sm:$0xff]
        %v234 = vld [vmem:[%s228 + $0x50] sm:$0xff]
        %v235 = vld [vmem:[%s228 + $0x1] sm:$0xff]
        %v236 = vld [vmem:[%s228 + $0x11] sm:$0xff]
        %v237 = vld [vmem:[%s228 + $0x21] sm:$0xff]
        %v238 = vld [vmem:[%s228 + $0x31] sm:$0xff]
        %v239 = vld [vmem:[%s228 + $0x41] sm:$0xff]
        %v240 = vld [vmem:[%s228 + $0x51] sm:$0xff]
        %v241 = vld [vmem:[%s228 + $0x2] sm:$0xff]
        %v242 = vld [vmem:[%s228 + $0x12] sm:$0xff]
        %v243 = vld [vmem:[%s228 + $0x22] sm:$0xff]
        %v244 = vld [vmem:[%s228 + $0x32] sm:$0xff]
        %v245 = vld [vmem:[%s228 + $0x42] sm:$0xff]
        %v246 = vld [vmem:[%s228 + $0x52] sm:$0xff]
        %253 = vrot.lane.b32.xlu0 %v193, 16
        %v254 = vpop.permute.xlu0 %253
        %255 = vrot.lane.b32.xlu0 %v194, 16
        %v256 = vpop.permute.xlu0 %255
        %257 = vrot.lane.b32.xlu0 %v195, 16
        %v258 = vpop.permute.xlu0 %257
        %259 = vrot.lane.b32.xlu0 %v196, 16
        %v260 = vpop.permute.xlu0 %259
        %261 = vrot.lane.b32.xlu0 %v197, 16
        %v262 = vpop.permute.xlu0 %261
        %263 = vrot.lane.b32.xlu0 %v198, 16
        %v264 = vpop.permute.xlu0 %263
        %277 = vrot.lane.b32.xlu0 %v199, 32
        %v278 = vpop.permute.xlu0 %277
        %279 = vrot.lane.b32.xlu0 %v200, 32
        %v280 = vpop.permute.xlu0 %279
        %281 = vrot.lane.b32.xlu0 %v201, 32
        %v282 = vpop.permute.xlu0 %281
        %283 = vrot.lane.b32.xlu0 %v202, 32
        %v284 = vpop.permute.xlu0 %283
        %285 = vrot.lane.b32.xlu0 %v203, 32
        %v286 = vpop.permute.xlu0 %285
        %287 = vrot.lane.b32.xlu0 %v204, 32
        %v288 = vpop.permute.xlu0 %287
        %301 = vrot.lane.b32.xlu0 %v208, 48
        %v302 = vpop.permute.xlu0 %301
        %303 = vrot.lane.b32.xlu0 %v209, 48
        %v304 = vpop.permute.xlu0 %303
        %305 = vrot.lane.b32.xlu0 %v210, 48
        %v306 = vpop.permute.xlu0 %305
        %307 = vrot.lane.b32.xlu0 %v211, 48
        %v308 = vpop.permute.xlu0 %307
        %309 = vrot.lane.b32.xlu0 %v212, 48
        %v310 = vpop.permute.xlu0 %309
        %311 = vrot.lane.b32.xlu0 %v213, 48
        %v312 = vpop.permute.xlu0 %311
        %325 = vrot.lane.b32.xlu0 %v214, 64
        %v326 = vpop.permute.xlu0 %325
        %327 = vrot.lane.b32.xlu0 %v215, 64
        %v328 = vpop.permute.xlu0 %327
        %329 = vrot.lane.b32.xlu0 %v216, 64
        %v330 = vpop.permute.xlu0 %329
        %331 = vrot.lane.b32.xlu0 %v217, 64
        %v332 = vpop.permute.xlu0 %331
        %333 = vrot.lane.b32.xlu0 %v218, 64
        %v334 = vpop.permute.xlu0 %333
        %335 = vrot.lane.b32.xlu0 %v219, 64
        %v336 = vpop.permute.xlu0 %335
        %349 = vrot.lane.b32.xlu0 %v220, 80
        %v350 = vpop.permute.xlu0 %349
        %351 = vrot.lane.b32.xlu0 %v221, 80
        %v352 = vpop.permute.xlu0 %351
        %353 = vrot.lane.b32.xlu0 %v222, 80
        %v354 = vpop.permute.xlu0 %353
        %355 = vrot.lane.b32.xlu0 %v223, 80
        %v356 = vpop.permute.xlu0 %355
        %357 = vrot.lane.b32.xlu0 %v224, 80
        %v358 = vpop.permute.xlu0 %357
        %359 = vrot.lane.b32.xlu0 %v225, 80
        %v360 = vpop.permute.xlu0 %359
        %373 = vrot.lane.b32.xlu0 %v229, 96
        %v374 = vpop.permute.xlu0 %373
        %375 = vrot.lane.b32.xlu0 %v230, 96
        %v376 = vpop.permute.xlu0 %375
        %377 = vrot.lane.b32.xlu0 %v231, 96
        %v378 = vpop.permute.xlu0 %377
        %379 = vrot.lane.b32.xlu0 %v232, 96
        %v380 = vpop.permute.xlu0 %379
        %381 = vrot.lane.b32.xlu0 %v233, 96
        %v382 = vpop.permute.xlu0 %381
        %383 = vrot.lane.b32.xlu0 %v234, 96
        %v384 = vpop.permute.xlu0 %383
        %397 = vrot.lane.b32.xlu0 %v235, 112
        %v398 = vpop.permute.xlu0 %397
        %399 = vrot.lane.b32.xlu0 %v236, 112
        %v400 = vpop.permute.xlu0 %399
        %401 = vrot.lane.b32.xlu0 %v237, 112
        %v402 = vpop.permute.xlu0 %401
        %403 = vrot.lane.b32.xlu0 %v238, 112
        %v404 = vpop.permute.xlu0 %403
        %405 = vrot.lane.b32.xlu0 %v239, 112
        %v406 = vpop.permute.xlu0 %405
        %407 = vrot.lane.b32.xlu0 %v240, 112
        %v408 = vpop.permute.xlu0 %407
        %vm415 = vcmask 130048
        %v416 = vsel %vm415, %v187, %v254
        %v417 = vsel %vm415, %v188, %v256
        %v418 = vsel %vm415, %v189, %v258
        %v419 = vsel %vm415, %v190, %v260
        %v420 = vsel %vm415, %v191, %v262
        %v421 = vsel %vm415, %v192, %v264
        %vm422 = vcmask 261120
        %v423 = vsel %vm422, %v416, %v278
        %v424 = vsel %vm422, %v417, %v280
        %v425 = vsel %vm422, %v418, %v282
        %v426 = vsel %vm422, %v419, %v284
        %v427 = vsel %vm422, %v420, %v286
        %v428 = vsel %vm422, %v421, %v288
        %vm429 = vcmask 392192
        %v430 = vsel %vm429, %v423, %v302
        %v431 = vsel %vm429, %v424, %v304
        %v432 = vsel %vm429, %v425, %v306
        %v433 = vsel %vm429, %v426, %v308
        %v434 = vsel %vm429, %v427, %v310
        %v435 = vsel %vm429, %v428, %v312
        %vm436 = vcmask 523264
        %v437 = vsel %vm436, %v430, %v326
        %v438 = vsel %vm436, %v431, %v328
        %v439 = vsel %vm436, %v432, %v330
        %v440 = vsel %vm436, %v433, %v332
        %v441 = vsel %vm436, %v434, %v334
        %v442 = vsel %vm436, %v435, %v336
        %vm443 = vcmask 654336
        %v444 = vsel %vm443, %v437, %v350
        %v445 = vsel %vm443, %v438, %v352
        %v446 = vsel %vm443, %v439, %v354
        %v447 = vsel %vm443, %v440, %v356
        %v448 = vsel %vm443, %v441, %v358
        %v449 = vsel %vm443, %v442, %v360
        %vm450 = vcmask 785408
        %v451 = vsel %vm450, %v444, %v374
        %v452 = vsel %vm450, %v445, %v376
        %v453 = vsel %vm450, %v446, %v378
        %v454 = vsel %vm450, %v447, %v380
        %v455 = vsel %vm450, %v448, %v382
        %v456 = vsel %vm450, %v449, %v384
        %vm457 = vcmask 916480
        %v458 = vsel %vm457, %v451, %v398
        %v459 = vsel %vm457, %v452, %v400
        %v460 = vsel %vm457, %v453, %v402
        %v461 = vsel %vm457, %v454, %v404
        %v462 = vsel %vm457, %v455, %v406
        %v463 = vsel %vm457, %v456, %v408
        %v464 = vld [vmem:[%s1] sm:$0xff]
        %v465 = vld [vmem:[%s1 + $0x8] sm:$0xff]
        %v466 = vld [vmem:[%s1 + $0x10] sm:$0xff]
        %v467 = vld [vmem:[%s1 + $0x18] sm:$0xff]
        %v468 = vld [vmem:[%s1 + $0x20] sm:$0xff]
        %v469 = vld [vmem:[%s1 + $0x28] sm:$0xff]
        %v470 = vld [vmem:[%s1 + $0x30] sm:$0xff]
        %v471 = vld [vmem:[%s1 + $0x38] sm:$0xff]
        %v472 = vld [vmem:[%s1 + $0x40] sm:$0xff]
        %v473 = vld [vmem:[%s1 + $0x48] sm:$0xff]
        %v474 = vld [vmem:[%s1 + $0x50] sm:$0xff]
        %v475 = vld [vmem:[%s1 + $0x58] sm:$0xff]
        %v476 = vld [vmem:[%s1 + $0x60] sm:$0xff]
        %v477 = vld [vmem:[%s1 + $0x68] sm:$0xff]
        %v478 = vld [vmem:[%s1 + $0x70] sm:$0xff]
        %v479 = vld [vmem:[%s1 + $0x78] sm:$0xff]
        %v480 = vld [vmem:[%s1 + $0x80] sm:$0xff]
        %v481 = vld [vmem:[%s1 + $0x88] sm:$0xff]
        %v482 = vld [vmem:[%s2] sm:$0x1]
        %v484 = vlaneseq
        %v485 = vshrl.u32 %v484, 7
        %v486 = vsub.s32 0, %v485
        %v487 = vrot.slane %v482, %v486
        %v490 = vsel %vm415, %v241, 0
        %v493 = vsel %vm415, %v242, 0
        %v496 = vsel %vm415, %v243, 0
        %v499 = vsel %vm415, %v244, 0
        %v502 = vsel %vm415, %v245, 0
        %v505 = vsel %vm415, %v246, 0
        %507 = vmatprep.subr.mxu0 0.0
        %508 = vmatpush1.msra.mxu0 %v479
        %509 = vmatprep.subr.mxu0 0.0
        %510 = vmatpush1.msra.mxu0 %v478
        %511 = vmatprep.subr.mxu0 0.0
        %512 = vmatpush1.msra.mxu0 %v477
        %513 = vmatprep.subr.mxu0 0.0
        %514 = vmatpush1.msra.mxu0 %v476
        %515 = vmatprep.subr.mxu0 0.0
        %516 = vmatpush1.msra.mxu0 %v475
        %517 = vmatprep.subr.mxu0 0.0
        %518 = vmatpush1.msra.mxu0 %v474
        %519 = vmatprep.subr.mxu0 0.0
        %520 = vmatpush1.msra.mxu0 %v473
        %521 = vmatprep.subr.mxu0 0.0
        %522 = vmatpush1.msra.mxu0 %v472
        %523 = vmatprep.subr.mxu0 0.0
        %524 = vmatpush1.msra.mxu0 %v471
        %525 = vmatprep.subr.mxu0 0.0
        %526 = vmatpush1.msra.mxu0 %v470
        %527 = vmatprep.subr.mxu0 0.0
        %528 = vmatpush1.msra.mxu0 %v469
        %529 = vmatprep.subr.mxu0 0.0
        %530 = vmatpush1.msra.mxu0 %v468
        %531 = vmatprep.subr.mxu0 0.0
        %532 = vmatpush1.msra.mxu0 %v467
        %533 = vmatprep.subr.mxu0 0.0
        %534 = vmatpush1.msra.mxu0 %v466
        %535 = vmatprep.subr.mxu0 0.0
        %536 = vmatpush1.msra.mxu0 %v465
        %537 = vmatprep.subr.mxu0 0.0
        %538 = vmatpush1.msra.mxu0 %v464
        %539 = vmatprep.subr.mxu0 0.0
        %540 = vmatpush2.msra.mxu0 0.0
        %541 = vmatprep.subr.mxu0 0.0
        %542 = vmatpush2.msra.mxu0 0.0
        %543 = vmatprep.subr.mxu0 0.0
        %544 = vmatpush2.msra.mxu0 0.0
        %545 = vmatprep.subr.mxu0 0.0
        %546 = vmatpush2.msra.mxu0 0.0
        %547 = vmatprep.subr.mxu0 0.0
        %548 = vmatpush2.msra.mxu0 0.0
        %549 = vmatprep.subr.mxu0 0.0
        %550 = vmatpush2.msra.mxu0 0.0
        %551 = vmatprep.subr.mxu0 0.0
        %552 = vmatpush2.msra.mxu0 0.0
        %553 = vmatprep.subr.mxu0 0.0
        %554 = vmatpush2.msra.mxu0 0.0
        %555 = vmatprep.subr.mxu0 0.0
        %556 = vmatpush2.msra.mxu0 0.0
        %557 = vmatprep.subr.mxu0 0.0
        %558 = vmatpush2.msra.mxu0 0.0
        %559 = vmatprep.subr.mxu0 0.0
        %560 = vmatpush2.msra.mxu0 0.0
        %561 = vmatprep.subr.mxu0 0.0
        %562 = vmatpush2.msra.mxu0 0.0
        %563 = vmatprep.subr.mxu0 0.0
        %564 = vmatpush2.msra.mxu0 0.0
        %565 = vmatprep.subr.mxu0 0.0
        %566 = vmatpush2.msra.mxu0 0.0
        %567 = vmatprep.subr.mxu0 0.0
        %568 = vmatpush2.msra.mxu0 %v481
        %569 = vmatprep.subr.mxu0 0.0
        %570 = vmatpush2.msra.mxu0 %v480
        %571 = vmatprep.mubr.f32.mxu0 %v490
        %572 = vmatmul.mubr.f32.gmra.mxu0 %v458
        %v573 = vpop.f32.mrf.mxu0
        %v574 = vadd.f32 %v487, %v573
        %v575 = vpop.f32.mrf.mxu0
        %576 = vmatprep.mubr.f32.mxu0 %v493
        %577 = vmatmul.mubr.f32.gmra.mxu0 %v459
        %v578 = vpop.f32.mrf.mxu0
        %v579 = vadd.f32 %v487, %v578
        %v580 = vpop.f32.mrf.mxu0
        %581 = vmatprep.mubr.f32.mxu0 %v496
        %582 = vmatmul.mubr.f32.gmra.mxu0 %v460
        %v583 = vpop.f32.mrf.mxu0
        %v584 = vadd.f32 %v487, %v583
        %v585 = vpop.f32.mrf.mxu0
        %586 = vmatprep.mubr.f32.mxu0 %v499
        %587 = vmatmul.mubr.f32.gmra.mxu0 %v461
        %v588 = vpop.f32.mrf.mxu0
        %v589 = vadd.f32 %v487, %v588
        %v590 = vpop.f32.mrf.mxu0
        %591 = vmatprep.mubr.f32.mxu0 %v502
        %592 = vmatmul.mubr.f32.gmra.mxu0 %v462
        %v593 = vpop.f32.mrf.mxu0
        %v594 = vadd.f32 %v487, %v593
        %v595 = vpop.f32.mrf.mxu0
        %596 = vmatprep.mubr.f32.mxu0 %v505
        %597 = vmatmul.mubr.f32.gmra.mxu0 %v463
        %v598 = vpop.f32.mrf.mxu0
        %v599 = vadd.f32 %v487, %v598
        %v600 = vpop.f32.mrf.mxu0
        %601 = vdwg.mxu0
        %vm602 = vcmask 64512
        %603 = vst.msk [vmem:[%s177] sm:$0xff] %vm602, %v574
        %604 = vst.msk [vmem:[%s177 + $0x8] sm:$0xff] %vm602, %v579
        %605 = vst.msk [vmem:[%s177 + $0x10] sm:$0xff] %vm602, %v584
        %606 = vst.msk [vmem:[%s177 + $0x18] sm:$0xff] %vm602, %v589
        %607 = vst.msk [vmem:[%s177 + $0x20] sm:$0xff] %vm602, %v594
        %608 = vst.msk [vmem:[%s177 + $0x28] sm:$0xff] %vm602, %v599
        %s609 = sand.u32 %s107, 1
        %s610 = scalar_lea.sflag [#allocation3], %s609
        %s611 = sand.u32 %s107, 1
        %s612 = smul.addr %s611, 48
        %s613 = scalar_lea.vmem [#allocation2], %s612
        // Predicated region
        $region33: #{tpu_custom_call.1} parent=31 // pred_check
          %p614 = pneg %p117
        $region34: #{tpu_custom_call.1} parent=31 // pred_check_branch
          %616 = sbr.rel (%p614) target = $region36
        $region35: #{tpu_custom_call.1} parent=31 // pred_region
          %s617 = smul.u32 6, %s22
          %s619 = ssub.s32 768, 768
          %620 = vsyncadd %s610, %s619
          %s621 = smul.addr %s21, 6
          %s622 = sadd.s32 %s617, %s621
          %s623 = smul.addr %s622, 128
          %s624 = scalar_lea.hbm %s3, %s623
          %s625 = sshll.u32 %s613, 4
          %s626 = int_to_ptr.vmem [resolvable:$true] %s625
          %631 = dma.vmem_to_hbm [thread:$0]  %s626, 768, %s624, %s610, 128, 128, 8
        $region36: #{tpu_custom_call.1} parent=31 // pred_fallthru
          _
      $region32: #{tpu_custom_call.1} parent=5 // pred_fallthru
        _
      %p632 = scmp.le.s32.totalorder 2, %s12
      // Predicated region
      $region37: #{tpu_custom_call.1} parent=5 // pred_check
        %p633 = pneg %p632
      $region38: #{tpu_custom_call.1} parent=5 // pred_check_branch
        %635 = sbr.rel (%p633) target = $region40
      $region39: #{tpu_custom_call.1} parent=5 // pred_region
        %s636 = ssub.s32 %s12, 2
        // Predicated region
        $region41: #{tpu_custom_call.1} parent=39 // pred_check
          %p637 = pneg %p123
        $region42: #{tpu_custom_call.1} parent=39 // pred_check_branch
          %639 = sbr.rel (%p637) target = $region44
        $region43: #{tpu_custom_call.1} parent=39 // pred_region
          %s640 = sand.u32 %s108, 1
          %s641 = scalar_lea.sflag [#allocation3], %s640
          %s642 = sand.u32 %s108, 1
          %s643 = smul.addr %s642, 48
          %s644 = scalar_lea.vmem [#allocation2], %s643
          %645 = dma.done %s641, 768
        $region44: #{tpu_custom_call.1} parent=39 // pred_fallthru
          _
      $region40: #{tpu_custom_call.1} parent=5 // pred_fallthru
        _
    $region6: #{tpu_custom_call.1} parent=1 // loop_footer
      %s16 = sadd.s32 1, %s12
    $region7: #{tpu_custom_call.1} parent=1 // loop_footer_branch
      %11 = sbr.rel target = $region3
    $region8: #{tpu_custom_call.1} parent=1 // loop_exit
      _
    %646 = vsyncpa [#allocation3], 1
    %s647 = scalar_lea.sflag [#allocation3], 1
    %648 = vsyncpa %s647, 1

</llo_original>
